<compile_context>
chip_gen: v6e
topology: v6e:2x2x1
jax: 0.10.0
libtpu: 0.0.40
codegen_flags: <defaults>
</compile_context>

<pallas_src>
import jax
import jax.numpy as jnp
from jax.experimental import pallas as pl
from jax.experimental.pallas import tpu as pltpu

N_IN = 784       # fc1 in_features
N_HID = 256      # fc1 out_features / fc2 in_features
N_OUT = 10       # fc2 out_features (true)
N_OUT_PAD = 128  # lane-dense padded output width


def _round_up(x, m):
    return ((x + m - 1) // m) * m


def _mlp_kernel(x_ref, w1t_ref, w2t_ref, o_ref):
    # x_ref:   [TM, 784]   f32  (VMEM, batch tile)
    # w1t_ref: [784, 256]  bf16 (VMEM, resident across grid)
    # w2t_ref: [256, 128]  bf16 (VMEM, resident; cols 10..127 are zero)
    # o_ref:   [TM, 128]   f32 (or bf16)
    xb = x_ref[...].astype(w1t_ref.dtype)            # in-kernel cast (free VPU op)
    h = jnp.dot(xb, w1t_ref[...], preferred_element_type=jnp.float32)
    h = jnp.maximum(h, 0.0)                          # ReLU on VPU
    out = jnp.dot(h.astype(w2t_ref.dtype), w2t_ref[...],
                  preferred_element_type=jnp.float32)
    o_ref[...] = out.astype(o_ref.dtype)


def prepare_weights(w1, w2, dtype=jnp.bfloat16):
    """One-time weight prep: transpose, cast, zero-pad fc2 output to 128 lanes.

    w1: [256, 784] (fc1.weight), w2: [10, 256] (fc2.weight)
    Returns (w1t [784,256], w2t_pad [256,128]) in `dtype`.
    """
    w1t = jnp.asarray(w1.T, dtype=dtype)                       # [784, 256]
    w2t = jnp.asarray(w2.T, dtype=dtype)                       # [256, 10]
    w2t_pad = jnp.pad(w2t, ((0, 0), (0, N_OUT_PAD - N_OUT)))   # [256, 128]
    return w1t, w2t_pad


def _default_tm(B):
    if B <= 8:
        return B  # tiny batch: one ragged tile covering the whole batch
    # >= 2 grid steps (both v7x TensorCores get work); cap at 512 so the f32 x
    # tile (double-buffered) + weights + intermediates fit v5e's 16 MiB scoped
    # VMEM default. 512-row tiles reach ~85% of HBM roofline.
    return min(512, _round_up(pl.cdiv(B, 2), 8))


def mlp_forward(x, w1t, w2t_pad, *, tm=None, out_dtype=jnp.float32):
    """x: [B, 784] f32, w1t: [784,256] bf16, w2t_pad: [256,128] bf16 -> [B, 10]."""
    B = x.shape[0]
    if tm is None:
        tm = _default_tm(B)

    grid = (pl.cdiv(B, tm),)

    x_item = jnp.dtype(x.dtype).itemsize
    w_item = jnp.dtype(w1t.dtype).itemsize
    o_item = jnp.dtype(out_dtype).itemsize
    cost = pl.CostEstimate(
        flops=2 * B * N_IN * N_HID + 2 * B * N_HID * N_OUT_PAD,
        transcendentals=0,
        bytes_accessed=(B * N_IN * x_item
                        + N_IN * N_HID * w_item
                        + N_HID * N_OUT_PAD * w_item
                        + B * N_OUT_PAD * o_item),
    )

    out = pl.pallas_call(
        _mlp_kernel,
        out_shape=jax.ShapeDtypeStruct((B, N_OUT_PAD), out_dtype),
        grid_spec=pl.GridSpec(
            grid=grid,
            in_specs=[
                pl.BlockSpec((tm, N_IN), lambda i: (i, 0)),         # x tile per step
                pl.BlockSpec((N_IN, N_HID), lambda i: (0, 0)),      # W1^T resident
                pl.BlockSpec((N_HID, N_OUT_PAD), lambda i: (0, 0)),  # W2^T resident
            ],
            out_specs=pl.BlockSpec((tm, N_OUT_PAD), lambda i: (i, 0)),
        ),
        compiler_params=pltpu.CompilerParams(
            dimension_semantics=("parallel",),
        ),
        cost_estimate=cost,
    )(x, w1t, w2t_pad)

    return out[:, :N_OUT]


def _init_linear_weight(key, out_features, in_features):
    # Deterministic init mimicking nn.Linear's kaiming-uniform bound (1/sqrt(fan_in)).
    bound = 1.0 / jnp.sqrt(jnp.float32(in_features))
    return jax.random.uniform(
        key, (out_features, in_features), dtype=jnp.float32,
        minval=-bound, maxval=bound,
    )


def _check(x, w1, w2, w1t, w2t_pad, out):
    # Reference 1: same bf16 precision path in plain JAX (tight tolerance).
    xb = x.astype(jnp.bfloat16)
    hb = jnp.maximum(jnp.dot(xb, w1t, preferred_element_type=jnp.float32), 0.0)
    ref_bf16 = jnp.dot(hb.astype(jnp.bfloat16), w2t_pad,
                       preferred_element_type=jnp.float32)[:, :N_OUT]
    assert jnp.allclose(out, ref_bf16, atol=1e-3, rtol=1e-3)

    # Reference 2: full-f32 PyTorch-equivalent forward (loose tol for bf16 weights).
    ref_f32 = jnp.maximum(x @ w1.T, 0.0) @ w2.T
    assert jnp.allclose(out, ref_f32, atol=5e-2, rtol=5e-2)


if __name__ == "__main__":
    key = jax.random.PRNGKey(0)
    k_x, k_x2, k_w1, k_w2 = jax.random.split(key, 4)

    w1 = _init_linear_weight(k_w1, N_HID, N_IN)   # fc1.weight [256, 784]
    w2 = _init_linear_weight(k_w2, N_OUT, N_HID)  # fc2.weight [10, 256]

    # One-time weight prep (transpose + bf16 + pad), outside the per-call path.
    w1t, w2t_pad = prepare_weights(w1, w2)

    # Small batch: single-tile path.
    B = 8
    x = jax.random.normal(k_x, (B, N_IN), dtype=jnp.float32)
    out = jax.block_until_ready(mlp_forward(x, w1t, w2t_pad))
    assert out.shape == (B, N_OUT)
    _check(x, w1, w2, w1t, w2t_pad, out)

    # Slightly larger batch: exercises the 2-tile grid with a ragged last block
    # (no wrapper-side padding).
    B2 = 20
    x2 = jax.random.normal(k_x2, (B2, N_IN), dtype=jnp.float32)
    out2 = jax.block_until_ready(mlp_forward(x2, w1t, w2t_pad))
    assert out2.shape == (B2, N_OUT)
    _check(x2, w1, w2, w1t, w2t_pad, out2)

    print("KERNEL_OK")
</pallas_src>

<mosaic_0001>
module attributes {stable_mosaic.version = 11 : i64} {
  func.func @_mlp_kernel(%arg0: i32, %arg1: memref<8x784xf32, #tpu.memory_space<vmem>>, %arg2: memref<784x256xbf16, #tpu.memory_space<vmem>>, %arg3: memref<256x128xbf16, #tpu.memory_space<vmem>>, %arg4: memref<8x128xf32, #tpu.memory_space<vmem>>) attributes {dimension_semantics = [#tpu.dimension_semantics<parallel>], iteration_bounds = array<i64: 1>, scalar_prefetch = 0 : i64, scratch_operands = 0 : i64, tpu.core_type = #tpu.core_type<tc>, window_params = [{transform_indices = @transform_0, window_bounds = array<i64: 8, 784>}, {pipeline_mode = #tpu.pipeline_mode<synchronous>, transform_indices = @transform_1, window_bounds = array<i64: 784, 256>}, {pipeline_mode = #tpu.pipeline_mode<synchronous>, transform_indices = @transform_2, window_bounds = array<i64: 256, 128>}, {transform_indices = @transform_3, window_bounds = array<i64: 8, 128>}]} {
    %c0 = arith.constant 0 : index
    %c0_0 = arith.constant 0 : index
    %0 = vector.load %arg1[%c0, %c0_0] : memref<8x784xf32, #tpu.memory_space<vmem>>, vector<8x784xf32>
    %1 = arith.truncf %0 : vector<8x784xf32> to vector<8x784xbf16>
    %c0_1 = arith.constant 0 : index
    %c0_2 = arith.constant 0 : index
    %2 = vector.load %arg2[%c0_1, %c0_2] : memref<784x256xbf16, #tpu.memory_space<vmem>>, vector<784x256xbf16>
    %cst = arith.constant dense<0.000000e+00> : vector<8x256xf32>
    %3 = tpu.matmul %1, %2, %cst {dimension_numbers = #tpu.dot_dimension_numbers<[1], [0], [0], [1], [0, 0, 1, 1], [], []>} : vector<8x784xbf16>, vector<784x256xbf16>, vector<8x256xf32> -> vector<8x256xf32>
    %cst_3 = arith.constant 0.000000e+00 : f32
    %4 = vector.broadcast %cst_3 : f32 to vector<8x256xf32>
    %5 = arith.maximumf %3, %4 : vector<8x256xf32>
    %6 = arith.truncf %5 : vector<8x256xf32> to vector<8x256xbf16>
    %c0_4 = arith.constant 0 : index
    %c0_5 = arith.constant 0 : index
    %7 = vector.load %arg3[%c0_4, %c0_5] : memref<256x128xbf16, #tpu.memory_space<vmem>>, vector<256x128xbf16>
    %cst_6 = arith.constant dense<0.000000e+00> : vector<8x128xf32>
    %8 = tpu.matmul %6, %7, %cst_6 {dimension_numbers = #tpu.dot_dimension_numbers<[1], [0], [0], [1], [0, 0, 1, 1], [], []>} : vector<8x256xbf16>, vector<256x128xbf16>, vector<8x128xf32> -> vector<8x128xf32>
    %c0_7 = arith.constant 0 : index
    %c0_8 = arith.constant 0 : index
    %9 = vector.load %arg4[%c0_7, %c0_8] : memref<8x128xf32, #tpu.memory_space<vmem>>, vector<8x128xf32>
    tpu.vector_store %arg4[%c0_7, %c0_8], %8 {strides = array<i32>} : memref<8x128xf32, #tpu.memory_space<vmem>>, vector<8x128xf32>,
    return
  }
  func.func @transform_0(%arg0: i32) -> (i32, i32) {
    %c0_i32 = arith.constant 0 : i32
    %c0_i32_0 = arith.constant 0 : i32
    return %arg0, %c0_i32 : i32, i32
  }
  func.func @transform_1(%arg0: i32) -> (i32, i32) {
    %c0_i32 = arith.constant 0 : i32
    %c0_i32_0 = arith.constant 0 : i32
    %c0_i32_1 = arith.constant 0 : i32
    return %c0_i32, %c0_i32_0 : i32, i32
  }
  func.func @transform_2(%arg0: i32) -> (i32, i32) {
    %c0_i32 = arith.constant 0 : i32
    %c0_i32_0 = arith.constant 0 : i32
    %c0_i32_1 = arith.constant 0 : i32
    return %c0_i32, %c0_i32_0 : i32, i32
  }
  func.func @transform_3(%arg0: i32) -> (i32, i32) {
    %c0_i32 = arith.constant 0 : i32
    %c0_i32_0 = arith.constant 0 : i32
    return %arg0, %c0_i32 : i32, i32
  }
}

</mosaic_0001>

<llo_original>
// kernel: tpu_custom_call.1
$region0: #{tpu_custom_call.1}
  #allocation0 [shape = 'u32[]', space=smem, size = 0x4, offset = 0x4, fixed_abs, tag = 'smem constant byte address 0x4 - core index']
  #allocation1 [shape = 'u32[144,128]{1,0:T(1,128)}', space=vmem, size = 0x12000, scoped, tag = 'internal scratch']
  %s0 = inlined_call_operand.hbm [shape: f32[8,784], index: 0, kind: input, shape index: {}]
  %s1 = inlined_call_operand.hbm [shape: bf16[784,256], index: 1, kind: input, shape index: {}]
  %s2 = inlined_call_operand.hbm [shape: bf16[256,128], index: 2, kind: input, shape index: {}]
  %s3 = inlined_call_operand.hbm [shape: f32[8,128], index: 3, kind: output, shape index: {}]
  %s4 = sld [smem:[#allocation0]]
  $region34: #{tpu_custom_call.1} parent=0
    _
  %s6 = ssub.s32 1, %s4
  %s7 = scalar_select 0, %s6, %s4
  $region1: #{tpu_custom_call.1} parent=0
    #allocation2 [shape = 'u8[28672]{0}', space=vmem, size = 0x7000, scoped, tag = 'input window, operand 0, single buffered']
    #allocation3 [shape = 's32[1]{0}', space=sflag, size = 0x4, scoped, tag = 'scoped memory for tpu_custom_call.1']
    #allocation4 [shape = 's32[1]{0}', space=sflag, size = 0x4, scoped, tag = 'scoped memory for tpu_custom_call.1']
    #allocation5 [shape = 'u8[401408]{0}', space=vmem, size = 0x62000, scoped, tag = 'input window, operand 1, single buffered']
    #allocation6 [shape = 's32[1]{0}', space=sflag, size = 0x4, scoped, tag = 'scoped memory for tpu_custom_call.1']
    #allocation7 [shape = 'u8[65536]{0}', space=vmem, size = 0x10000, scoped, tag = 'input window, operand 2, single buffered']
    #allocation8 [shape = 'u8[4096]{0}', space=vmem, size = 0x1000, scoped, tag = 'output window, operand 0, single buffered']
    %8 = vsyncpa [#allocation3], 0
    %9 = vsyncpa [#allocation6], 0
    %10 = vsyncpa [#allocation4], 0
    // Predicated region
    $region2: #{tpu_custom_call.1} parent=1 // pred_check
      _
    $region3: #{tpu_custom_call.1} parent=1 // pred_check_branch
      %12 = sbr.rel (0) target = $region5
    $region4: #{tpu_custom_call.1} parent=1 // pred_region
      %s14 = ssub.s32 896, 896
      %15 = vsyncadd [#allocation3], %s14
      %s17 = sshll.u32 [#allocation2], 4
      %s18 = int_to_ptr.vmem [resolvable:$true] %s17
      %20 = dma.hbm_to_vmem [thread:$0]  %s0, 896, %s18, [#allocation3]
    $region5: #{tpu_custom_call.1} parent=1 // pred_fallthru
      _
    // Predicated region
    $region6: #{tpu_custom_call.1} parent=1 // pred_check
      _
    $region7: #{tpu_custom_call.1} parent=1 // pred_check_branch
      %22 = sbr.rel (0) target = $region9
    $region8: #{tpu_custom_call.1} parent=1 // pred_region
      %s24 = ssub.s32 12544, 12544
      %25 = vsyncadd [#allocation6], %s24
      %s26 = sshll.u32 [#allocation5], 4
      %s27 = int_to_ptr.vmem [resolvable:$true] %s26
      %32 = dma.hbm_to_vmem [thread:$0]  %s1, 12544, %s27, [#allocation6], 128, 128, 8
    $region9: #{tpu_custom_call.1} parent=1 // pred_fallthru
      _
    // Predicated region
    $region10: #{tpu_custom_call.1} parent=1 // pred_check
      _
    $region11: #{tpu_custom_call.1} parent=1 // pred_check_branch
      %34 = sbr.rel (0) target = $region13
    $region12: #{tpu_custom_call.1} parent=1 // pred_region
      %s36 = ssub.s32 2048, 2048
      %37 = vsyncadd [#allocation6], %s36
      %s38 = sshll.u32 [#allocation7], 4
      %s39 = int_to_ptr.vmem [resolvable:$true] %s38
      %44 = dma.hbm_to_vmem [thread:$0]  %s2, 2048, %s39, [#allocation6], 64, 64, 4
    $region13: #{tpu_custom_call.1} parent=1 // pred_fallthru
      _
    // Predicated region
    $region14: #{tpu_custom_call.1} parent=1 // pred_check
      _
    $region15: #{tpu_custom_call.1} parent=1 // pred_check_branch
      %46 = sbr.rel (0) target = $region17
    $region16: #{tpu_custom_call.1} parent=1 // pred_region
      %47 = dma.done [#allocation3], 896
    $region17: #{tpu_custom_call.1} parent=1 // pred_fallthru
      _
    // Predicated region
    $region18: #{tpu_custom_call.1} parent=1 // pred_check
      _
    $region19: #{tpu_custom_call.1} parent=1 // pred_check_branch
      %49 = sbr.rel (0) target = $region21
    $region20: #{tpu_custom_call.1} parent=1 // pred_region
      %50 = dma.done [#allocation6], 12544
    $region21: #{tpu_custom_call.1} parent=1 // pred_fallthru
      _
    // Predicated region
    $region22: #{tpu_custom_call.1} parent=1 // pred_check
      _
    $region23: #{tpu_custom_call.1} parent=1 // pred_check_branch
      %52 = sbr.rel (0) target = $region25
    $region24: #{tpu_custom_call.1} parent=1 // pred_region
      %53 = dma.done [#allocation6], 2048
    $region25: #{tpu_custom_call.1} parent=1 // pred_fallthru
      _
    %v55 = vld [vmem:[#allocation2] sm:$0xff]
    %v56 = vld [vmem:[#allocation2 + $0x8] sm:$0xff]
    %v57 = vld [vmem:[#allocation2 + $0x10] sm:$0xff]
    %v58 = vld [vmem:[#allocation2 + $0x18] sm:$0xff]
    %v59 = vld [vmem:[#allocation2 + $0x20] sm:$0xff]
    %v60 = vld [vmem:[#allocation2 + $0x28] sm:$0xff]
    %v61 = vld [vmem:[#allocation2 + $0x30] sm:$0xff]
    %v62 = vpack.c.bf16 %v55, %v55
    %v63 = vpack.c.bf16 %v56, %v56
    %v64 = vpack.c.bf16 %v57, %v57
    %v65 = vpack.c.bf16 %v58, %v58
    %v66 = vpack.c.bf16 %v59, %v59
    %v67 = vpack.c.bf16 %v60, %v60
    %v68 = vpack.c.bf16 %v61, %v61
    %v69 = vld [vmem:[#allocation5] sm:$0xff]
    %v70 = vld [vmem:[#allocation5 + $0x8] sm:$0xff]
    %v71 = vld [vmem:[#allocation5 + $0x10] sm:$0xff]
    %v72 = vld [vmem:[#allocation5 + $0x18] sm:$0xff]
    %v73 = vld [vmem:[#allocation5 + $0x20] sm:$0xff]
    %v74 = vld [vmem:[#allocation5 + $0x28] sm:$0xff]
    %v75 = vld [vmem:[#allocation5 + $0x30] sm:$0xff]
    %v76 = vld [vmem:[#allocation5 + $0x38] sm:$0xff]
    %v77 = vld [vmem:[#allocation5 + $0x40] sm:$0xff]
    %v78 = vld [vmem:[#allocation5 + $0x48] sm:$0xff]
    %v79 = vld [vmem:[#allocation5 + $0x50] sm:$0xff]
    %v80 = vld [vmem:[#allocation5 + $0x58] sm:$0xff]
    %v81 = vld [vmem:[#allocation5 + $0x60] sm:$0xff]
    %v82 = vld [vmem:[#allocation5 + $0x68] sm:$0xff]
    %v83 = vld [vmem:[#allocation5 + $0x70] sm:$0xff]
    %v84 = vld [vmem:[#allocation5 + $0x78] sm:$0xff]
    %v85 = vld [vmem:[#allocation5 + $0x80] sm:$0xff]
    %v86 = vld [vmem:[#allocation5 + $0x88] sm:$0xff]
    %v87 = vld [vmem:[#allocation5 + $0x90] sm:$0xff]
    %v88 = vld [vmem:[#allocation5 + $0x98] sm:$0xff]
    %v89 = vld [vmem:[#allocation5 + $0xa0] sm:$0xff]
    %v90 = vld [vmem:[#allocation5 + $0xa8] sm:$0xff]
    %v91 = vld [vmem:[#allocation5 + $0xb0] sm:$0xff]
    %v92 = vld [vmem:[#allocation5 + $0xb8] sm:$0xff]
    %v93 = vld [vmem:[#allocation5 + $0xc0] sm:$0xff]
    %v94 = vld [vmem:[#allocation5 + $0xc8] sm:$0xff]
    %v95 = vld [vmem:[#allocation5 + $0xd0] sm:$0xff]
    %v96 = vld [vmem:[#allocation5 + $0xd8] sm:$0xff]
    %v97 = vld [vmem:[#allocation5 + $0xe0] sm:$0xff]
    %v98 = vld [vmem:[#allocation5 + $0xe8] sm:$0xff]
    %v99 = vld [vmem:[#allocation5 + $0xf0] sm:$0xff]
    %v100 = vld [vmem:[#allocation5 + $0xf8] sm:$0xff]
    %v101 = vld [vmem:[#allocation5 + $0x100] sm:$0xff]
    %v102 = vld [vmem:[#allocation5 + $0x108] sm:$0xff]
    %v103 = vld [vmem:[#allocation5 + $0x110] sm:$0xff]
    %v104 = vld [vmem:[#allocation5 + $0x118] sm:$0xff]
    %v105 = vld [vmem:[#allocation5 + $0x120] sm:$0xff]
    %v106 = vld [vmem:[#allocation5 + $0x128] sm:$0xff]
    %v107 = vld [vmem:[#allocation5 + $0x130] sm:$0xff]
    %v108 = vld [vmem:[#allocation5 + $0x138] sm:$0xff]
    %v109 = vld [vmem:[#allocation5 + $0x140] sm:$0xff]
    %v110 = vld [vmem:[#allocation5 + $0x148] sm:$0xff]
    %v111 = vld [vmem:[#allocation5 + $0x150] sm:$0xff]
    %v112 = vld [vmem:[#allocation5 + $0x158] sm:$0xff]
    %v113 = vld [vmem:[#allocation5 + $0x160] sm:$0xff]
    %v114 = vld [vmem:[#allocation5 + $0x168] sm:$0xff]
    %v115 = vld [vmem:[#allocation5 + $0x170] sm:$0xff]
    %v116 = vld [vmem:[#allocation5 + $0x178] sm:$0xff]
    %v117 = vld [vmem:[#allocation5 + $0x180] sm:$0xff]
    %v118 = vld [vmem:[#allocation5 + $0x188] sm:$0xff]
    %v119 = vld [vmem:[#allocation5 + $0x190] sm:$0xff]
    %v120 = vld [vmem:[#allocation5 + $0x198] sm:$0xff]
    %v121 = vld [vmem:[#allocation5 + $0x1a0] sm:$0xff]
    %v122 = vld [vmem:[#allocation5 + $0x1a8] sm:$0xff]
    %v123 = vld [vmem:[#allocation5 + $0x1b0] sm:$0xff]
    %v124 = vld [vmem:[#allocation5 + $0x1b8] sm:$0xff]
    %v125 = vld [vmem:[#allocation5 + $0x1c0] sm:$0xff]
    %v126 = vld [vmem:[#allocation5 + $0x1c8] sm:$0xff]
    %v127 = vld [vmem:[#allocation5 + $0x1d0] sm:$0xff]
    %v128 = vld [vmem:[#allocation5 + $0x1d8] sm:$0xff]
    %v129 = vld [vmem:[#allocation5 + $0x1e0] sm:$0xff]
    %v130 = vld [vmem:[#allocation5 + $0x1e8] sm:$0xff]
    %v131 = vld [vmem:[#allocation5 + $0x1f0] sm:$0xff]
    %v132 = vld [vmem:[#allocation5 + $0x1f8] sm:$0xff]
    %v133 = vld [vmem:[#allocation5 + $0x200] sm:$0xff]
    %v134 = vld [vmem:[#allocation5 + $0x208] sm:$0xff]
    %v135 = vld [vmem:[#allocation5 + $0x210] sm:$0xff]
    %v136 = vld [vmem:[#allocation5 + $0x218] sm:$0xff]
    %v137 = vld [vmem:[#allocation5 + $0x220] sm:$0xff]
    %v138 = vld [vmem:[#allocation5 + $0x228] sm:$0xff]
    %v139 = vld [vmem:[#allocation5 + $0x230] sm:$0xff]
    %v140 = vld [vmem:[#allocation5 + $0x238] sm:$0xff]
    %v141 = vld [vmem:[#allocation5 + $0x240] sm:$0xff]
    %v142 = vld [vmem:[#allocation5 + $0x248] sm:$0xff]
    %v143 = vld [vmem:[#allocation5 + $0x250] sm:$0xff]
    %v144 = vld [vmem:[#allocation5 + $0x258] sm:$0xff]
    %v145 = vld [vmem:[#allocation5 + $0x260] sm:$0xff]
    %v146 = vld [vmem:[#allocation5 + $0x268] sm:$0xff]
    %v147 = vld [vmem:[#allocation5 + $0x270] sm:$0xff]
    %v148 = vld [vmem:[#allocation5 + $0x278] sm:$0xff]
    %v149 = vld [vmem:[#allocation5 + $0x280] sm:$0xff]
    %v150 = vld [vmem:[#allocation5 + $0x288] sm:$0xff]
    %v151 = vld [vmem:[#allocation5 + $0x290] sm:$0xff]
    %v152 = vld [vmem:[#allocation5 + $0x298] sm:$0xff]
    %v153 = vld [vmem:[#allocation5 + $0x2a0] sm:$0xff]
    %v154 = vld [vmem:[#allocation5 + $0x2a8] sm:$0xff]
    %v155 = vld [vmem:[#allocation5 + $0x2b0] sm:$0xff]
    %v156 = vld [vmem:[#allocation5 + $0x2b8] sm:$0xff]
    %v157 = vld [vmem:[#allocation5 + $0x2c0] sm:$0xff]
    %v158 = vld [vmem:[#allocation5 + $0x2c8] sm:$0xff]
    %v159 = vld [vmem:[#allocation5 + $0x2d0] sm:$0xff]
    %v160 = vld [vmem:[#allocation5 + $0x2d8] sm:$0xff]
    %v161 = vld [vmem:[#allocation5 + $0x2e0] sm:$0xff]
    %v162 = vld [vmem:[#allocation5 + $0x2e8] sm:$0xff]
    %v163 = vld [vmem:[#allocation5 + $0x2f0] sm:$0xff]
    %v164 = vld [vmem:[#allocation5 + $0x2f8] sm:$0xff]
    %v165 = vld [vmem:[#allocation5 + $0x300] sm:$0xff]
    %v166 = vld [vmem:[#allocation5 + $0x308] sm:$0xff]
    %v265 = vunpack.c.l.b16 %v69
    %v266 = vunpack.c.h.b16 %v69
    %v267 = vunpack.c.l.b16 %v70
    %v268 = vunpack.c.h.b16 %v70
    %v269 = vunpack.c.l.b16 %v71
    %v270 = vunpack.c.h.b16 %v71
    %v271 = vunpack.c.l.b16 %v72
    %v272 = vunpack.c.h.b16 %v72
    %v273 = vunpack.c.l.b16 %v73
    %v274 = vunpack.c.h.b16 %v73
    %v275 = vunpack.c.l.b16 %v74
    %v276 = vunpack.c.h.b16 %v74
    %v277 = vunpack.c.l.b16 %v75
    %v278 = vunpack.c.h.b16 %v75
    %v279 = vunpack.c.l.b16 %v76
    %v280 = vunpack.c.h.b16 %v76
    %v281 = vunpack.c.l.b16 %v77
    %v282 = vunpack.c.h.b16 %v77
    %v283 = vunpack.c.l.b16 %v78
    %v284 = vunpack.c.h.b16 %v78
    %v285 = vunpack.c.l.b16 %v79
    %v286 = vunpack.c.h.b16 %v79
    %v287 = vunpack.c.l.b16 %v80
    %v288 = vunpack.c.h.b16 %v80
    %v289 = vunpack.c.l.b16 %v81
    %v290 = vunpack.c.h.b16 %v81
    %v291 = vunpack.c.l.b16 %v82
    %v292 = vunpack.c.h.b16 %v82
    %v293 = vunpack.c.l.b16 %v83
    %v294 = vunpack.c.h.b16 %v83
    %v295 = vunpack.c.l.b16 %v84
    %v296 = vunpack.c.h.b16 %v84
    %v297 = vunpack.c.l.b16 %v85
    %v298 = vunpack.c.h.b16 %v85
    %v299 = vunpack.c.l.b16 %v86
    %v300 = vunpack.c.h.b16 %v86
    %v301 = vunpack.c.l.b16 %v87
    %v302 = vunpack.c.h.b16 %v87
    %v303 = vunpack.c.l.b16 %v88
    %v304 = vunpack.c.h.b16 %v88
    %v305 = vunpack.c.l.b16 %v89
    %v306 = vunpack.c.h.b16 %v89
    %v307 = vunpack.c.l.b16 %v90
    %v308 = vunpack.c.h.b16 %v90
    %v309 = vunpack.c.l.b16 %v91
    %v310 = vunpack.c.h.b16 %v91
    %v311 = vunpack.c.l.b16 %v92
    %v312 = vunpack.c.h.b16 %v92
    %v313 = vunpack.c.l.b16 %v93
    %v314 = vunpack.c.h.b16 %v93
    %v315 = vunpack.c.l.b16 %v94
    %v316 = vunpack.c.h.b16 %v94
    %v317 = vunpack.c.l.b16 %v95
    %v318 = vunpack.c.h.b16 %v95
    %v319 = vunpack.c.l.b16 %v96
    %v320 = vunpack.c.h.b16 %v96
    %v321 = vunpack.c.l.b16 %v97
    %v322 = vunpack.c.h.b16 %v97
    %v323 = vunpack.c.l.b16 %v98
    %v324 = vunpack.c.h.b16 %v98
    %v325 = vunpack.c.l.b16 %v99
    %v326 = vunpack.c.h.b16 %v99
    %v327 = vunpack.c.l.b16 %v100
    %v328 = vunpack.c.h.b16 %v100
    %v329 = vunpack.c.l.b16 %v101
    %v330 = vunpack.c.h.b16 %v101
    %v331 = vunpack.c.l.b16 %v102
    %v332 = vunpack.c.h.b16 %v102
    %v333 = vunpack.c.l.b16 %v103
    %v334 = vunpack.c.h.b16 %v103
    %v335 = vunpack.c.l.b16 %v104
    %v336 = vunpack.c.h.b16 %v104
    %v337 = vunpack.c.l.b16 %v105
    %v338 = vunpack.c.h.b16 %v105
    %v339 = vunpack.c.l.b16 %v106
    %v340 = vunpack.c.h.b16 %v106
    %v341 = vunpack.c.l.b16 %v107
    %v342 = vunpack.c.h.b16 %v107
    %v343 = vunpack.c.l.b16 %v108
    %v344 = vunpack.c.h.b16 %v108
    %v345 = vunpack.c.l.b16 %v109
    %v346 = vunpack.c.h.b16 %v109
    %v347 = vunpack.c.l.b16 %v110
    %v348 = vunpack.c.h.b16 %v110
    %v349 = vunpack.c.l.b16 %v111
    %v350 = vunpack.c.h.b16 %v111
    %v351 = vunpack.c.l.b16 %v112
    %v352 = vunpack.c.h.b16 %v112
    %v353 = vunpack.c.l.b16 %v113
    %v354 = vunpack.c.h.b16 %v113
    %v355 = vunpack.c.l.b16 %v114
    %v356 = vunpack.c.h.b16 %v114
    %v357 = vunpack.c.l.b16 %v115
    %v358 = vunpack.c.h.b16 %v115
    %v359 = vunpack.c.l.b16 %v116
    %v360 = vunpack.c.h.b16 %v116
    %v361 = vunpack.c.l.b16 %v117
    %v362 = vunpack.c.h.b16 %v117
    %v363 = vunpack.c.l.b16 %v118
    %v364 = vunpack.c.h.b16 %v118
    %v365 = vunpack.c.l.b16 %v119
    %v366 = vunpack.c.h.b16 %v119
    %v367 = vunpack.c.l.b16 %v120
    %v368 = vunpack.c.h.b16 %v120
    %v369 = vunpack.c.l.b16 %v121
    %v370 = vunpack.c.h.b16 %v121
    %v371 = vunpack.c.l.b16 %v122
    %v372 = vunpack.c.h.b16 %v122
    %v373 = vunpack.c.l.b16 %v123
    %v374 = vunpack.c.h.b16 %v123
    %v375 = vunpack.c.l.b16 %v124
    %v376 = vunpack.c.h.b16 %v124
    %v377 = vunpack.c.l.b16 %v125
    %v378 = vunpack.c.h.b16 %v125
    %v379 = vunpack.c.l.b16 %v126
    %v380 = vunpack.c.h.b16 %v126
    %v381 = vunpack.c.l.b16 %v127
    %v382 = vunpack.c.h.b16 %v127
    %v383 = vunpack.c.l.b16 %v128
    %v384 = vunpack.c.h.b16 %v128
    %v385 = vunpack.c.l.b16 %v129
    %v386 = vunpack.c.h.b16 %v129
    %v387 = vunpack.c.l.b16 %v130
    %v388 = vunpack.c.h.b16 %v130
    %v389 = vunpack.c.l.b16 %v131
    %v390 = vunpack.c.h.b16 %v131
    %v391 = vunpack.c.l.b16 %v132
    %v392 = vunpack.c.h.b16 %v132
    %v393 = vunpack.c.l.b16 %v133
    %v394 = vunpack.c.h.b16 %v133
    %v395 = vunpack.c.l.b16 %v134
    %v396 = vunpack.c.h.b16 %v134
    %v397 = vunpack.c.l.b16 %v135
    %v398 = vunpack.c.h.b16 %v135
    %v399 = vunpack.c.l.b16 %v136
    %v400 = vunpack.c.h.b16 %v136
    %v401 = vunpack.c.l.b16 %v137
    %v402 = vunpack.c.h.b16 %v137
    %v403 = vunpack.c.l.b16 %v138
    %v404 = vunpack.c.h.b16 %v138
    %v405 = vunpack.c.l.b16 %v139
    %v406 = vunpack.c.h.b16 %v139
    %v407 = vunpack.c.l.b16 %v140
    %v408 = vunpack.c.h.b16 %v140
    %v409 = vunpack.c.l.b16 %v141
    %v410 = vunpack.c.h.b16 %v141
    %v411 = vunpack.c.l.b16 %v142
    %v412 = vunpack.c.h.b16 %v142
    %v413 = vunpack.c.l.b16 %v143
    %v414 = vunpack.c.h.b16 %v143
    %v415 = vunpack.c.l.b16 %v144
    %v416 = vunpack.c.h.b16 %v144
    %v417 = vunpack.c.l.b16 %v145
    %v418 = vunpack.c.h.b16 %v145
    %v419 = vunpack.c.l.b16 %v146
    %v420 = vunpack.c.h.b16 %v146
    %v421 = vunpack.c.l.b16 %v147
    %v422 = vunpack.c.h.b16 %v147
    %v423 = vunpack.c.l.b16 %v148
    %v424 = vunpack.c.h.b16 %v148
    %v425 = vunpack.c.l.b16 %v149
    %v426 = vunpack.c.h.b16 %v149
    %v427 = vunpack.c.l.b16 %v150
    %v428 = vunpack.c.h.b16 %v150
    %v429 = vunpack.c.l.b16 %v151
    %v430 = vunpack.c.h.b16 %v151
    %v431 = vunpack.c.l.b16 %v152
    %v432 = vunpack.c.h.b16 %v152
    %v433 = vunpack.c.l.b16 %v153
    %v434 = vunpack.c.h.b16 %v153
    %v435 = vunpack.c.l.b16 %v154
    %v436 = vunpack.c.h.b16 %v154
    %v437 = vunpack.c.l.b16 %v155
    %v438 = vunpack.c.h.b16 %v155
    %v439 = vunpack.c.l.b16 %v156
    %v440 = vunpack.c.h.b16 %v156
    %v441 = vunpack.c.l.b16 %v157
    %v442 = vunpack.c.h.b16 %v157
    %v443 = vunpack.c.l.b16 %v158
    %v444 = vunpack.c.h.b16 %v158
    %v445 = vunpack.c.l.b16 %v159
    %v446 = vunpack.c.h.b16 %v159
    %v447 = vunpack.c.l.b16 %v160
    %v448 = vunpack.c.h.b16 %v160
    %v449 = vunpack.c.l.b16 %v161
    %v450 = vunpack.c.h.b16 %v161
    %v451 = vunpack.c.l.b16 %v162
    %v452 = vunpack.c.h.b16 %v162
    %v453 = vunpack.c.l.b16 %v163
    %v454 = vunpack.c.h.b16 %v163
    %v455 = vunpack.c.l.b16 %v164
    %v456 = vunpack.c.h.b16 %v164
    %v457 = vunpack.c.l.b16 %v165
    %v458 = vunpack.c.h.b16 %v165
    %v459 = vunpack.c.l.b16 %v166
    %v460 = vunpack.c.h.b16 %v166
    %v461 = vpack.c.b16 %v267, %v265
    %v462 = vpack.c.b16 %v268, %v266
    %v463 = vpack.c.b16 %v271, %v269
    %v464 = vpack.c.b16 %v272, %v270
    %v465 = vpack.c.b16 %v275, %v273
    %v466 = vpack.c.b16 %v276, %v274
    %v467 = vpack.c.b16 %v279, %v277
    %v468 = vpack.c.b16 %v280, %v278
    %v469 = vpack.c.b16 %v283, %v281
    %v470 = vpack.c.b16 %v284, %v282
    %v471 = vpack.c.b16 %v287, %v285
    %v472 = vpack.c.b16 %v288, %v286
    %v473 = vpack.c.b16 %v291, %v289
    %v474 = vpack.c.b16 %v292, %v290
    %v475 = vpack.c.b16 %v295, %v293
    %v476 = vpack.c.b16 %v296, %v294
    %v477 = vpack.c.b16 %v299, %v297
    %v478 = vpack.c.b16 %v300, %v298
    %v479 = vpack.c.b16 %v303, %v301
    %v480 = vpack.c.b16 %v304, %v302
    %v481 = vpack.c.b16 %v307, %v305
    %v482 = vpack.c.b16 %v308, %v306
    %v483 = vpack.c.b16 %v311, %v309
    %v484 = vpack.c.b16 %v312, %v310
    %v485 = vpack.c.b16 %v315, %v313
    %v486 = vpack.c.b16 %v316, %v314
    %v487 = vpack.c.b16 %v319, %v317
    %v488 = vpack.c.b16 %v320, %v318
    %v489 = vpack.c.b16 %v323, %v321
    %v490 = vpack.c.b16 %v324, %v322
    %v491 = vpack.c.b16 %v327, %v325
    %v492 = vpack.c.b16 %v328, %v326
    %v493 = vpack.c.b16 %v331, %v329
    %v494 = vpack.c.b16 %v332, %v330
    %v495 = vpack.c.b16 %v335, %v333
    %v496 = vpack.c.b16 %v336, %v334
    %v497 = vpack.c.b16 %v339, %v337
    %v498 = vpack.c.b16 %v340, %v338
    %v499 = vpack.c.b16 %v343, %v341
    %v500 = vpack.c.b16 %v344, %v342
    %v501 = vpack.c.b16 %v347, %v345
    %v502 = vpack.c.b16 %v348, %v346
    %v503 = vpack.c.b16 %v351, %v349
    %v504 = vpack.c.b16 %v352, %v350
    %v505 = vpack.c.b16 %v355, %v353
    %v506 = vpack.c.b16 %v356, %v354
    %v507 = vpack.c.b16 %v359, %v357
    %v508 = vpack.c.b16 %v360, %v358
    %v509 = vpack.c.b16 %v363, %v361
    %v510 = vpack.c.b16 %v364, %v362
    %v511 = vpack.c.b16 %v367, %v365
    %v512 = vpack.c.b16 %v368, %v366
    %v513 = vpack.c.b16 %v371, %v369
    %v514 = vpack.c.b16 %v372, %v370
    %v515 = vpack.c.b16 %v375, %v373
    %v516 = vpack.c.b16 %v376, %v374
    %v517 = vpack.c.b16 %v379, %v377
    %v518 = vpack.c.b16 %v380, %v378
    %v519 = vpack.c.b16 %v383, %v381
    %v520 = vpack.c.b16 %v384, %v382
    %v521 = vpack.c.b16 %v387, %v385
    %v522 = vpack.c.b16 %v388, %v386
    %v523 = vpack.c.b16 %v391, %v389
    %v524 = vpack.c.b16 %v392, %v390
    %v525 = vpack.c.b16 %v395, %v393
    %v526 = vpack.c.b16 %v396, %v394
    %v527 = vpack.c.b16 %v399, %v397
    %v528 = vpack.c.b16 %v400, %v398
    %v529 = vpack.c.b16 %v403, %v401
    %v530 = vpack.c.b16 %v404, %v402
    %v531 = vpack.c.b16 %v407, %v405
    %v532 = vpack.c.b16 %v408, %v406
    %v533 = vpack.c.b16 %v411, %v409
    %v534 = vpack.c.b16 %v412, %v410
    %v535 = vpack.c.b16 %v415, %v413
    %v536 = vpack.c.b16 %v416, %v414
    %v537 = vpack.c.b16 %v419, %v417
    %v538 = vpack.c.b16 %v420, %v418
    %v539 = vpack.c.b16 %v423, %v421
    %v540 = vpack.c.b16 %v424, %v422
    %v541 = vpack.c.b16 %v427, %v425
    %v542 = vpack.c.b16 %v428, %v426
    %v543 = vpack.c.b16 %v431, %v429
    %v544 = vpack.c.b16 %v432, %v430
    %v545 = vpack.c.b16 %v435, %v433
    %v546 = vpack.c.b16 %v436, %v434
    %v547 = vpack.c.b16 %v439, %v437
    %v548 = vpack.c.b16 %v440, %v438
    %v549 = vpack.c.b16 %v443, %v441
    %v550 = vpack.c.b16 %v444, %v442
    %v551 = vpack.c.b16 %v447, %v445
    %v552 = vpack.c.b16 %v448, %v446
    %v553 = vpack.c.b16 %v451, %v449
    %v554 = vpack.c.b16 %v452, %v450
    %v555 = vpack.c.b16 %v455, %v453
    %v556 = vpack.c.b16 %v456, %v454
    %v557 = vpack.c.b16 %v459, %v457
    %v558 = vpack.c.b16 %v460, %v458
    %vm657 = vcmask 130048
    %v659 = vsel %vm657, %v68, 0
    %661 = vmatprep.subr.bf16.mxu0 %v476
    %662 = vmatpush1.bf16.msra.mxu0 %v475
    %663 = vmatprep.subr.bf16.mxu0 %v474
    %664 = vmatpush1.bf16.msra.mxu0 %v473
    %665 = vmatprep.subr.bf16.mxu0 %v472
    %666 = vmatpush1.bf16.msra.mxu0 %v471
    %667 = vmatprep.subr.bf16.mxu0 %v470
    %668 = vmatpush1.bf16.msra.mxu0 %v469
    %669 = vmatprep.subr.bf16.mxu0 %v468
    %670 = vmatpush1.bf16.msra.mxu0 %v467
    %671 = vmatprep.subr.bf16.mxu0 %v466
    %672 = vmatpush1.bf16.msra.mxu0 %v465
    %673 = vmatprep.subr.bf16.mxu0 %v464
    %674 = vmatpush1.bf16.msra.mxu0 %v463
    %675 = vmatprep.subr.bf16.mxu0 %v462
    %676 = vmatpush1.bf16.msra.mxu0 %v461
    %677 = vmatprep.subr.bf16.mxu0 %v492
    %678 = vmatpush2.bf16.msra.mxu0 %v491
    %679 = vmatprep.subr.bf16.mxu0 %v490
    %680 = vmatpush2.bf16.msra.mxu0 %v489
    %681 = vmatprep.subr.bf16.mxu0 %v488
    %682 = vmatpush2.bf16.msra.mxu0 %v487
    %683 = vmatprep.subr.bf16.mxu0 %v486
    %684 = vmatpush2.bf16.msra.mxu0 %v485
    %685 = vmatprep.subr.bf16.mxu0 %v484
    %686 = vmatpush2.bf16.msra.mxu0 %v483
    %687 = vmatprep.subr.bf16.mxu0 %v482
    %688 = vmatpush2.bf16.msra.mxu0 %v481
    %689 = vmatprep.subr.bf16.mxu0 %v480
    %690 = vmatpush2.bf16.msra.mxu0 %v479
    %691 = vmatprep.subr.bf16.mxu0 %v478
    %692 = vmatpush2.bf16.msra.mxu0 %v477
    %693 = vmatprep.mubr.bf16.mxu0 %v63
    %694 = vmatmul.mubr.bf16.gmra.mxu0 %v62
    %v695 = vpop.f32.mrf.mxu0
    %v696 = vadd.f32 0.0, %v695
    %v697 = vpop.f32.mrf.mxu0
    %v698 = vadd.f32 0.0, %v697
    %v699 = vpop.f32.mrf.mxu0
    %v700 = vpop.f32.mrf.mxu0
    %701 = vdwg.mxu0
    %702 = vmatprep.subr.bf16.mxu0 %v508
    %703 = vmatpush1.bf16.msra.mxu0 %v507
    %704 = vmatprep.subr.bf16.mxu0 %v506
    %705 = vmatpush1.bf16.msra.mxu0 %v505
    %706 = vmatprep.subr.bf16.mxu0 %v504
    %707 = vmatpush1.bf16.msra.mxu0 %v503
    %708 = vmatprep.subr.bf16.mxu0 %v502
    %709 = vmatpush1.bf16.msra.mxu0 %v501
    %710 = vmatprep.subr.bf16.mxu0 %v500
    %711 = vmatpush1.bf16.msra.mxu0 %v499
    %712 = vmatprep.subr.bf16.mxu0 %v498
    %713 = vmatpush1.bf16.msra.mxu0 %v497
    %714 = vmatprep.subr.bf16.mxu0 %v496
    %715 = vmatpush1.bf16.msra.mxu0 %v495
    %716 = vmatprep.subr.bf16.mxu0 %v494
    %717 = vmatpush1.bf16.msra.mxu0 %v493
    %718 = vmatprep.subr.bf16.mxu0 %v524
    %719 = vmatpush2.bf16.msra.mxu0 %v523
    %720 = vmatprep.subr.bf16.mxu0 %v522
    %721 = vmatpush2.bf16.msra.mxu0 %v521
    %722 = vmatprep.subr.bf16.mxu0 %v520
    %723 = vmatpush2.bf16.msra.mxu0 %v519
    %724 = vmatprep.subr.bf16.mxu0 %v518
    %725 = vmatpush2.bf16.msra.mxu0 %v517
    %726 = vmatprep.subr.bf16.mxu0 %v516
    %727 = vmatpush2.bf16.msra.mxu0 %v515
    %728 = vmatprep.subr.bf16.mxu0 %v514
    %729 = vmatpush2.bf16.msra.mxu0 %v513
    %730 = vmatprep.subr.bf16.mxu0 %v512
    %731 = vmatpush2.bf16.msra.mxu0 %v511
    %732 = vmatprep.subr.bf16.mxu0 %v510
    %733 = vmatpush2.bf16.msra.mxu0 %v509
    %734 = vmatprep.mubr.bf16.mxu0 %v65
    %735 = vmatmul.mubr.bf16.gmra.mxu0 %v64
    %v736 = vpop.f32.mrf.mxu0
    %v737 = vadd.f32 %v696, %v736
    %v738 = vpop.f32.mrf.mxu0
    %v739 = vadd.f32 %v698, %v738
    %v740 = vpop.f32.mrf.mxu0
    %v741 = vpop.f32.mrf.mxu0
    %742 = vdwg.mxu0
    %743 = vmatprep.subr.bf16.mxu0 %v540
    %744 = vmatpush1.bf16.msra.mxu0 %v539
    %745 = vmatprep.subr.bf16.mxu0 %v538
    %746 = vmatpush1.bf16.msra.mxu0 %v537
    %747 = vmatprep.subr.bf16.mxu0 %v536
    %748 = vmatpush1.bf16.msra.mxu0 %v535
    %749 = vmatprep.subr.bf16.mxu0 %v534
    %750 = vmatpush1.bf16.msra.mxu0 %v533
    %751 = vmatprep.subr.bf16.mxu0 %v532
    %752 = vmatpush1.bf16.msra.mxu0 %v531
    %753 = vmatprep.subr.bf16.mxu0 %v530
    %754 = vmatpush1.bf16.msra.mxu0 %v529
    %755 = vmatprep.subr.bf16.mxu0 %v528
    %756 = vmatpush1.bf16.msra.mxu0 %v527
    %757 = vmatprep.subr.bf16.mxu0 %v526
    %758 = vmatpush1.bf16.msra.mxu0 %v525
    %759 = vmatprep.subr.bf16.mxu0 %v556
    %760 = vmatpush2.bf16.msra.mxu0 %v555
    %761 = vmatprep.subr.bf16.mxu0 %v554
    %762 = vmatpush2.bf16.msra.mxu0 %v553
    %763 = vmatprep.subr.bf16.mxu0 %v552
    %764 = vmatpush2.bf16.msra.mxu0 %v551
    %765 = vmatprep.subr.bf16.mxu0 %v550
    %766 = vmatpush2.bf16.msra.mxu0 %v549
    %767 = vmatprep.subr.bf16.mxu0 %v548
    %768 = vmatpush2.bf16.msra.mxu0 %v547
    %769 = vmatprep.subr.bf16.mxu0 %v546
    %770 = vmatpush2.bf16.msra.mxu0 %v545
    %771 = vmatprep.subr.bf16.mxu0 %v544
    %772 = vmatpush2.bf16.msra.mxu0 %v543
    %773 = vmatprep.subr.bf16.mxu0 %v542
    %774 = vmatpush2.bf16.msra.mxu0 %v541
    %775 = vmatprep.mubr.bf16.mxu0 %v67
    %776 = vmatmul.mubr.bf16.gmra.mxu0 %v66
    %v777 = vpop.f32.mrf.mxu0
    %v778 = vadd.f32 %v737, %v777
    %v779 = vpop.f32.mrf.mxu0
    %v780 = vadd.f32 %v739, %v779
    %v781 = vpop.f32.mrf.mxu0
    %v782 = vpop.f32.mrf.mxu0
    %783 = vdwg.mxu0
    %784 = vmatprep.subr.bf16.mxu0 0
    %785 = vmatpush1.bf16.msra.mxu0 0
    %786 = vmatprep.subr.bf16.mxu0 0
    %787 = vmatpush1.bf16.msra.mxu0 0
    %788 = vmatprep.subr.bf16.mxu0 0
    %789 = vmatpush1.bf16.msra.mxu0 0
    %790 = vmatprep.subr.bf16.mxu0 0
    %791 = vmatpush1.bf16.msra.mxu0 0
    %792 = vmatprep.subr.bf16.mxu0 0
    %793 = vmatpush1.bf16.msra.mxu0 0
    %794 = vmatprep.subr.bf16.mxu0 0
    %795 = vmatpush1.bf16.msra.mxu0 0
    %796 = vmatprep.subr.bf16.mxu0 0
    %797 = vmatpush1.bf16.msra.mxu0 0
    %798 = vmatprep.subr.bf16.mxu0 %v558
    %799 = vmatpush1.bf16.msra.mxu0 %v557
    %800 = vmatprep.subr.bf16.mxu0 0
    %801 = vmatpush2.bf16.msra.mxu0 0
    %802 = vmatprep.subr.bf16.mxu0 0
    %803 = vmatpush2.bf16.msra.mxu0 0
    %804 = vmatprep.subr.bf16.mxu0 0
    %805 = vmatpush2.bf16.msra.mxu0 0
    %806 = vmatprep.subr.bf16.mxu0 0
    %807 = vmatpush2.bf16.msra.mxu0 0
    %808 = vmatprep.subr.bf16.mxu0 0
    %809 = vmatpush2.bf16.msra.mxu0 0
    %810 = vmatprep.subr.bf16.mxu0 0
    %811 = vmatpush2.bf16.msra.mxu0 0
    %812 = vmatprep.subr.bf16.mxu0 0
    %813 = vmatpush2.bf16.msra.mxu0 0
    %814 = vmatprep.subr.bf16.mxu0 0
    %815 = vmatpush2.bf16.msra.mxu0 0
    %816 = vmatprep.mubr.bf16.mxu0 0
    %817 = vmatmul.mubr.bf16.gmra.mxu0 %v659
    %v818 = vpop.f32.mrf.mxu0
    %v819 = vadd.f32 %v778, %v818
    %v820 = vpop.f32.mrf.mxu0
    %v821 = vadd.f32 %v780, %v820
    %v822 = vpop.f32.mrf.mxu0
    %v823 = vpop.f32.mrf.mxu0
    %824 = vdwg.mxu0
    %v825 = vmax.f32 %v819, 0.0
    %v826 = vmax.f32 %v821, 0.0
    %v827 = vpack.c.bf16 %v825, %v825
    %v828 = vpack.c.bf16 %v826, %v826
    %v829 = vld [vmem:[#allocation7] sm:$0xf]
    %v830 = vld [vmem:[#allocation7 + $0x4] sm:$0xf]
    %v831 = vld [vmem:[#allocation7 + $0x8] sm:$0xf]
    %v832 = vld [vmem:[#allocation7 + $0xc] sm:$0xf]
    %v833 = vld [vmem:[#allocation7 + $0x10] sm:$0xf]
    %v834 = vld [vmem:[#allocation7 + $0x14] sm:$0xf]
    %v835 = vld [vmem:[#allocation7 + $0x18] sm:$0xf]
    %v836 = vld [vmem:[#allocation7 + $0x1c] sm:$0xf]
    %v837 = vld [vmem:[#allocation7 + $0x20] sm:$0xf]
    %v838 = vld [vmem:[#allocation7 + $0x24] sm:$0xf]
    %v839 = vld [vmem:[#allocation7 + $0x28] sm:$0xf]
    %v840 = vld [vmem:[#allocation7 + $0x2c] sm:$0xf]
    %v841 = vld [vmem:[#allocation7 + $0x30] sm:$0xf]
    %v842 = vld [vmem:[#allocation7 + $0x34] sm:$0xf]
    %v843 = vld [vmem:[#allocation7 + $0x38] sm:$0xf]
    %v844 = vld [vmem:[#allocation7 + $0x3c] sm:$0xf]
    %v845 = vld [vmem:[#allocation7 + $0x40] sm:$0xf]
    %v846 = vld [vmem:[#allocation7 + $0x44] sm:$0xf]
    %v847 = vld [vmem:[#allocation7 + $0x48] sm:$0xf]
    %v848 = vld [vmem:[#allocation7 + $0x4c] sm:$0xf]
    %v849 = vld [vmem:[#allocation7 + $0x50] sm:$0xf]
    %v850 = vld [vmem:[#allocation7 + $0x54] sm:$0xf]
    %v851 = vld [vmem:[#allocation7 + $0x58] sm:$0xf]
    %v852 = vld [vmem:[#allocation7 + $0x5c] sm:$0xf]
    %v853 = vld [vmem:[#allocation7 + $0x60] sm:$0xf]
    %v854 = vld [vmem:[#allocation7 + $0x64] sm:$0xf]
    %v855 = vld [vmem:[#allocation7 + $0x68] sm:$0xf]
    %v856 = vld [vmem:[#allocation7 + $0x6c] sm:$0xf]
    %v857 = vld [vmem:[#allocation7 + $0x70] sm:$0xf]
    %v858 = vld [vmem:[#allocation7 + $0x74] sm:$0xf]
    %v859 = vld [vmem:[#allocation7 + $0x78] sm:$0xf]
    %v860 = vld [vmem:[#allocation7 + $0x7c] sm:$0xf]
    %v893 = vunpack.c.l.b16 %v829
    %v894 = vunpack.c.l.b16 %v830
    %v895 = vunpack.c.l.b16 %v831
    %v896 = vunpack.c.l.b16 %v832
    %v897 = vunpack.c.l.b16 %v833
    %v898 = vunpack.c.l.b16 %v834
    %v899 = vunpack.c.l.b16 %v835
    %v900 = vunpack.c.l.b16 %v836
    %v901 = vunpack.c.l.b16 %v837
    %v902 = vunpack.c.l.b16 %v838
    %v903 = vunpack.c.l.b16 %v839
    %v904 = vunpack.c.l.b16 %v840
    %v905 = vunpack.c.l.b16 %v841
    %v906 = vunpack.c.l.b16 %v842
    %v907 = vunpack.c.l.b16 %v843
    %v908 = vunpack.c.l.b16 %v844
    %v909 = vunpack.c.l.b16 %v845
    %v910 = vunpack.c.l.b16 %v846
    %v911 = vunpack.c.l.b16 %v847
    %v912 = vunpack.c.l.b16 %v848
    %v913 = vunpack.c.l.b16 %v849
    %v914 = vunpack.c.l.b16 %v850
    %v915 = vunpack.c.l.b16 %v851
    %v916 = vunpack.c.l.b16 %v852
    %v917 = vunpack.c.l.b16 %v853
    %v918 = vunpack.c.l.b16 %v854
    %v919 = vunpack.c.l.b16 %v855
    %v920 = vunpack.c.l.b16 %v856
    %v921 = vunpack.c.l.b16 %v857
    %v922 = vunpack.c.l.b16 %v858
    %v923 = vunpack.c.l.b16 %v859
    %v924 = vunpack.c.l.b16 %v860
    %v925 = vpack.c.b16 %v894, %v893
    %v926 = vpack.c.b16 %v896, %v895
    %v927 = vpack.c.b16 %v898, %v897
    %v928 = vpack.c.b16 %v900, %v899
    %v929 = vpack.c.b16 %v902, %v901
    %v930 = vpack.c.b16 %v904, %v903
    %v931 = vpack.c.b16 %v906, %v905
    %v932 = vpack.c.b16 %v908, %v907
    %v933 = vpack.c.b16 %v910, %v909
    %v934 = vpack.c.b16 %v912, %v911
    %v935 = vpack.c.b16 %v914, %v913
    %v936 = vpack.c.b16 %v916, %v915
    %v937 = vpack.c.b16 %v918, %v917
    %v938 = vpack.c.b16 %v920, %v919
    %v939 = vpack.c.b16 %v922, %v921
    %v940 = vpack.c.b16 %v924, %v923
    %957 = vmatprep.subr.bf16.mxu0 0
    %958 = vmatpush1.bf16.msra.mxu0 %v932
    %959 = vmatprep.subr.bf16.mxu0 0
    %960 = vmatpush1.bf16.msra.mxu0 %v931
    %961 = vmatprep.subr.bf16.mxu0 0
    %962 = vmatpush1.bf16.msra.mxu0 %v930
    %963 = vmatprep.subr.bf16.mxu0 0
    %964 = vmatpush1.bf16.msra.mxu0 %v929
    %965 = vmatprep.subr.bf16.mxu0 0
    %966 = vmatpush1.bf16.msra.mxu0 %v928
    %967 = vmatprep.subr.bf16.mxu0 0
    %968 = vmatpush1.bf16.msra.mxu0 %v927
    %969 = vmatprep.subr.bf16.mxu0 0
    %970 = vmatpush1.bf16.msra.mxu0 %v926
    %971 = vmatprep.subr.bf16.mxu0 0
    %972 = vmatpush1.bf16.msra.mxu0 %v925
    %973 = vmatprep.subr.bf16.mxu0 0
    %974 = vmatpush2.bf16.msra.mxu0 %v940
    %975 = vmatprep.subr.bf16.mxu0 0
    %976 = vmatpush2.bf16.msra.mxu0 %v939
    %977 = vmatprep.subr.bf16.mxu0 0
    %978 = vmatpush2.bf16.msra.mxu0 %v938
    %979 = vmatprep.subr.bf16.mxu0 0
    %980 = vmatpush2.bf16.msra.mxu0 %v937
    %981 = vmatprep.subr.bf16.mxu0 0
    %982 = vmatpush2.bf16.msra.mxu0 %v936
    %983 = vmatprep.subr.bf16.mxu0 0
    %984 = vmatpush2.bf16.msra.mxu0 %v935
    %985 = vmatprep.subr.bf16.mxu0 0
    %986 = vmatpush2.bf16.msra.mxu0 %v934
    %987 = vmatprep.subr.bf16.mxu0 0
    %988 = vmatpush2.bf16.msra.mxu0 %v933
    %989 = vmatprep.mubr.bf16.mxu0 %v828
    %990 = vmatmul.mubr.bf16.gmra.mxu0 %v827
    %v991 = vpop.f32.mrf.mxu0
    %v992 = vadd.f32 0.0, %v991
    %v993 = vpop.f32.mrf.mxu0
    %v994 = vpop.f32.mrf.mxu0
    %v995 = vpop.f32.mrf.mxu0
    %996 = vdwg.mxu0
    %997 = vst [vmem:[#allocation8] sm:$0xff] %v992
    // Predicated region
    $region26: #{tpu_custom_call.1} parent=1 // pred_check
      _
    $region27: #{tpu_custom_call.1} parent=1 // pred_check_branch
      %999 = sbr.rel (0) target = $region29
    $region28: #{tpu_custom_call.1} parent=1 // pred_region
      %s1001 = ssub.s32 128, 128
      %1002 = vsyncadd [#allocation4], %s1001
      %s1004 = sshll.u32 [#allocation8], 4
      %s1005 = int_to_ptr.vmem [resolvable:$true] %s1004
      %1007 = dma.vmem_to_hbm [thread:$0]  %s1005, 128, %s3, [#allocation4]
    $region29: #{tpu_custom_call.1} parent=1 // pred_fallthru
      _
    // Predicated region
    $region30: #{tpu_custom_call.1} parent=1 // pred_check
      _
    $region31: #{tpu_custom_call.1} parent=1 // pred_check_branch
      %1009 = sbr.rel (0) target = $region33
    $region32: #{tpu_custom_call.1} parent=1 // pred_region
      %1010 = dma.done [#allocation4], 128
    $region33: #{tpu_custom_call.1} parent=1 // pred_fallthru
      _
    %1011 = vsyncpa [#allocation3], 1
    %1012 = vsyncpa [#allocation6], 1
    %1013 = vsyncpa [#allocation4], 1

</llo_original>
